<compile_context>
chip_gen: v6e
topology: v6e:2x2x1
jax: 0.10.0
libtpu: 0.0.40
codegen_flags: <defaults>
</compile_context>

<pallas_src>
import math

import jax
import jax.numpy as jnp
from jax.experimental import pallas as pl
from jax.experimental.pallas import tpu as pltpu

_BLOCK_BYTES_CAP = 8 * 1024 * 1024     # ~8 MiB per block buffer
_VMEM_LIMIT_BYTES = 48 * 1024 * 1024   # 2 bufs x (in+out) x 8 MiB + headroom


def _copy_kernel(x_ref, o_ref):
    # Identity copy of the current (TM, TN) block.
    o_ref[...] = x_ref[...]


def _sublane_unit(dtype):
    """Rows per vreg for this dtype: 8 for f32, 16 for bf16, 32 for int8/fp8."""
    return max(8, 32 // jnp.dtype(dtype).itemsize)


def _staging_shape(total, sublane):
    """Lane/sublane-dense 2-D view (R, C) of `total` elements.

    Prefers C a multiple of 128 (full lanes) with R a multiple of the
    dtype-aware sublane unit. Returns None if total is not 128-aligned.
    """
    if total % 128 != 0:
        return None
    for c in (2048, 1024, 512, 256, 128):
        if total % c == 0 and (total // c) % sublane == 0:
            return total // c, c
    # 128-lane aligned but rows not sublane-divisible: full-extent row block.
    return total // 128, 128


def _divisor_tile(extent, unit, cap_elems):
    """Largest multiple of `unit` dividing `extent`, at most `cap_elems`.

    Downward search from the cap so trace time stays O(cap/unit), not O(extent).
    Callers guarantee extent % unit == 0.
    """
    cap = min(extent, max(unit, cap_elems))
    start = (cap // unit) * unit
    for t in range(start, unit - 1, -unit):
        if extent % t == 0:
            return t
    return unit


def pallas_reshape(x, target_shape, *, materialize=False):
    """torch Reshape(*target_shape): x.view((x.shape[0],) + target_shape)."""
    batch = x.shape[0]
    feat = math.prod(x.shape[1:])
    assert feat == math.prod(target_shape), (
        f"cannot view {x.shape} as {(batch,) + tuple(target_shape)}")
    out_shape = (batch,) + tuple(target_shape)

    if not materialize:
        # Zero-cost metadata path (production default): a row-major reshape is
        # a bitcast — no HBM round-trip, no kernel launch.
        return jnp.reshape(x, out_shape)

    total = batch * feat
    dtype_bytes = jnp.dtype(x.dtype).itemsize
    sublane = _sublane_unit(x.dtype)

    staged = _staging_shape(total, sublane)
    if staged is None:
        # Not 128-aligned: keep the natural (batch, feat) view but still grid
        # over rows so large tensors stay pipelined and VMEM-safe.
        R, C = batch, feat
        TN = C  # full extent (layout-legal even when C % 128 != 0)
        if R % sublane == 0:
            max_rows = max(sublane, _BLOCK_BYTES_CAP // max(1, C * dtype_bytes))
            TM = _divisor_tile(R, sublane, max_rows)
        else:
            # TODO(synk): huge batches not divisible by the sublane unit fall
            # back to one full-extent row block; add a padded tail kernel if
            # that ever becomes a VMEM concern.
            TM = R
    else:
        R, C = staged
        TN = C  # C is a multiple of 128 -> full, unmasked vst stores
        if R % sublane == 0:
            max_rows = max(sublane, _BLOCK_BYTES_CAP // max(1, C * dtype_bytes))
            TM = _divisor_tile(R, sublane, max_rows)
        else:
            TM = R  # rare: row count not sublane-divisible; full-extent rows

    x2d = jnp.reshape(x, (R, C))
    grid = (R // TM, C // TN)
    nbytes = total * dtype_bytes

    out2d = pl.pallas_call(
        _copy_kernel,
        out_shape=jax.ShapeDtypeStruct((R, C), x2d.dtype),
        grid_spec=pltpu.PrefetchScalarGridSpec(
            num_scalar_prefetch=0,
            grid=grid,
            in_specs=[pl.BlockSpec((TM, TN), lambda i, j: (i, j))],
            out_specs=pl.BlockSpec((TM, TN), lambda i, j: (i, j)),
        ),
        compiler_params=pltpu.CompilerParams(
            dimension_semantics=("parallel", "parallel"),
            vmem_limit_bytes=_VMEM_LIMIT_BYTES,
        ),
        # Pure memory traffic — lets XLA's scheduler overlap neighbors.
        cost_estimate=pl.CostEstimate(
            flops=0, transcendentals=0, bytes_accessed=2 * nbytes),
    )(x2d)

    return jnp.reshape(out2d, out_shape)


if __name__ == "__main__":
    key = jax.random.PRNGKey(0)
    # batch=2, channels=4, spatial=16; Reshape(8, 128): (2,4,16,16) -> (2,8,128)
    x = jax.random.normal(key, (2, 4, 16, 16), dtype=jnp.float32)
    target_shape = (8, 128)

    # Reference (same semantics as torch .view()).
    ref = jnp.reshape(x, (x.shape[0],) + target_shape)

    # Materialized Pallas copy path (explicitly requested).
    out = jax.jit(lambda a: pallas_reshape(a, target_shape, materialize=True))(x)
    out = jax.block_until_ready(out)
    assert out.shape == (2, 8, 128)
    assert out.dtype == x.dtype
    assert bool(jnp.all(out == ref))

    # Production-default zero-cost metadata path.
    out_meta = jax.block_until_ready(pallas_reshape(x, target_shape))
    assert out_meta.shape == (2, 8, 128)
    assert bool(jnp.all(out_meta == ref))

    # bf16 exercises the dtype-aware sublane unit (16 rows per vreg).
    x_bf16 = x.astype(jnp.bfloat16)
    out_bf16 = jax.jit(
        lambda a: pallas_reshape(a, (16, 64), materialize=True))(x_bf16)
    out_bf16 = jax.block_until_ready(out_bf16)
    assert bool(jnp.all(out_bf16 == jnp.reshape(x_bf16, (2, 16, 64))))

    # Non-128-aligned fallback path (still an exact identity copy).
    x_odd = jax.random.normal(jax.random.PRNGKey(1), (2, 3, 5), dtype=jnp.float32)
    out_odd = jax.jit(lambda a: pallas_reshape(a, (15,), materialize=True))(x_odd)
    out_odd = jax.block_until_ready(out_odd)
    assert bool(jnp.all(out_odd == jnp.reshape(x_odd, (2, 15))))

    print("KERNEL_OK")
</pallas_src>

<mosaic_0001>
module attributes {stable_mosaic.version = 11 : i64} {
  func.func @_copy_kernel(%arg0: i32, %arg1: i32, %arg2: memref<8x256xf32, #tpu.memory_space<vmem>>, %arg3: memref<8x256xf32, #tpu.memory_space<vmem>>) attributes {dimension_semantics = [#tpu.dimension_semantics<parallel>, #tpu.dimension_semantics<parallel>], iteration_bounds = array<i64: 1, 1>, scalar_prefetch = 0 : i64, scratch_operands = 0 : i64, tpu.core_type = #tpu.core_type<tc>, window_params = [{transform_indices = @transform_0, window_bounds = array<i64: 8, 256>}, {transform_indices = @transform_1, window_bounds = array<i64: 8, 256>}]} {
    %c0 = arith.constant 0 : index
    %c0_0 = arith.constant 0 : index
    %0 = vector.load %arg2[%c0, %c0_0] : memref<8x256xf32, #tpu.memory_space<vmem>>, vector<8x256xf32>
    %c0_1 = arith.constant 0 : index
    %c0_2 = arith.constant 0 : index
    %1 = vector.load %arg3[%c0_1, %c0_2] : memref<8x256xf32, #tpu.memory_space<vmem>>, vector<8x256xf32>
    tpu.vector_store %arg3[%c0_1, %c0_2], %0 {strides = array<i32>} : memref<8x256xf32, #tpu.memory_space<vmem>>, vector<8x256xf32>,
    return
  }
  func.func @transform_0(%arg0: i32, %arg1: i32) -> (i32, i32) {
    %c0_i32 = arith.constant 0 : i32
    return %arg0, %arg1 : i32, i32
  }
  func.func @transform_1(%arg0: i32, %arg1: i32) -> (i32, i32) {
    %c0_i32 = arith.constant 0 : i32
    return %arg0, %arg1 : i32, i32
  }
}

</mosaic_0001>

<llo_original>
// kernel: _lambda_.1
$region0: #{_lambda_.1}
  #allocation0 [shape = 'u32[]', space=smem, size = 0x4, offset = 0x4, fixed_abs, tag = 'smem constant byte address 0x4 - core index']
  #allocation1 [shape = 'u32[144,128]{1,0:T(1,128)}', space=vmem, size = 0x12000, scoped, tag = 'internal scratch']
  %s0 = inlined_call_operand.vmem [shape: f32[8,256], index: 0, kind: input, shape index: {}]
  %s1 = inlined_call_operand.vmem [shape: f32[8,256], index: 1, kind: output, shape index: {}]
  %s2 = sld [smem:[#allocation0]]
  $region14: #{_lambda_.1} parent=0
    _
  %s4 = ssub.s32 1, %s2
  %s5 = scalar_select 0, %s4, %s2
  // Predicated region
  $region2: #{_lambda_.1} parent=0 // pred_check
    _
  $region3: #{_lambda_.1} parent=0 // pred_check_branch
    %7 = sbr.rel (0) target = $region5
  $region4: #{_lambda_.1} parent=0 // pred_region
    _
  $region5: #{_lambda_.1} parent=0 // pred_fallthru
    _
  %v8 = vld [vmem:[%s0] sm:$0xff]
  %v9 = vld [vmem:[%s0 + $0x8] sm:$0xff]
  %10 = vst [vmem:[%s1] sm:$0xff] %v8
  %11 = vst [vmem:[%s1 + $0x8] sm:$0xff] %v9
  // Predicated region
  $region6: #{_lambda_.1} parent=0 // pred_check
    _
  $region7: #{_lambda_.1} parent=0 // pred_check_branch
    %13 = sbr.rel (0) target = $region9
  $region8: #{_lambda_.1} parent=0 // pred_region
    _
  $region9: #{_lambda_.1} parent=0 // pred_fallthru
    _
  // Predicated region
  $region10: #{_lambda_.1} parent=0 // pred_check
    _
  $region11: #{_lambda_.1} parent=0 // pred_check_branch
    %15 = sbr.rel (0) target = $region13
  $region12: #{_lambda_.1} parent=0 // pred_region
    _
  $region13: #{_lambda_.1} parent=0 // pred_fallthru
    _

</llo_original>
